<compile_context>
chip_gen: v7x
topology: tpu7x:2x2x1
jax: 0.10.0
libtpu: 0.0.40
codegen_flags: <defaults>
</compile_context>

<pallas_src>
import jax
import jax.numpy as jnp
from jax.experimental import pallas as pl
from jax.experimental.pallas import tpu as pltpu


def _round_up(n, m):
    return ((n + m - 1) // m) * m


def _mlp_kernel(x_ref,
                w1_ref, b1_ref,
                w2_ref, b2_ref,
                w3_ref, b3_ref,
                w4_ref, b4_ref,
                w5_ref, b5_ref,
                out_ref):
    """One batch tile through all 5 layers, fully VMEM-resident."""
    h = x_ref[...]                                       # f32 [tile_m, in_pad]

    def layer(h, w_ref, b_ref, relu):
        # bf16 x bf16 -> f32 accumulation on the MXU; epilogue in f32 on VPU.
        acc = jnp.dot(h.astype(w_ref.dtype), w_ref[...],
                      preferred_element_type=jnp.float32)
        acc = acc + b_ref[...]
        return jnp.maximum(acc, 0.0) if relu else acc

    h = layer(h, w1_ref, b1_ref, True)
    h = layer(h, w2_ref, b2_ref, True)
    h = layer(h, w3_ref, b3_ref, True)
    h = layer(h, w4_ref, b4_ref, True)
    h = layer(h, w5_ref, b5_ref, False)                  # final layer: no ReLU
    out_ref[...] = h


def init_params(key, in_size, num_classes):
    """PyTorch-style nn.Linear init: W:[out,in], b:[out], U(-1/sqrt(fan_in), +)."""
    dims = [in_size, 468, 256, 150, 68, num_classes]
    params = []
    for i in range(5):
        key, kw, kb = jax.random.split(key, 3)
        fan_in, fan_out = dims[i], dims[i + 1]
        bound = 1.0 / jnp.sqrt(fan_in)
        w = jax.random.uniform(kw, (fan_out, fan_in), jnp.float32, -bound, bound)
        b = jax.random.uniform(kb, (fan_out,), jnp.float32, -bound, bound)
        params.append((w, b))
    return params, dims


def prepare_params(params, dims):
    """Pad to lane multiples, transpose to [in_pad, out_pad], cast W to bf16."""
    dims_pad = [_round_up(d, 128) for d in dims]
    prepped = []
    for i, (w, b) in enumerate(params):
        out_f, in_f = w.shape
        in_pad, out_pad = dims_pad[i], dims_pad[i + 1]
        w_t = jnp.zeros((in_pad, out_pad), jnp.float32).at[:in_f, :out_f].set(w.T)
        b_p = jnp.zeros((1, out_pad), jnp.float32).at[0, :out_f].set(b)
        prepped.append((w_t.astype(jnp.bfloat16), b_p))   # bias stays f32
    return prepped, dims_pad


def neural_net_forward(x, prepped, num_classes):
    batch, in_size = x.shape
    in_pad = prepped[0][0].shape[0]
    out_pad = prepped[-1][0].shape[1]

    # Batch tiling: 128-row MXU tiles for large batches, minimal 8-sublane
    # padding for tiny ones (no point splitting a latency-bound 8-row problem).
    tile_m = 128 if batch > 128 else _round_up(max(batch, 8), 8)
    batch_pad = _round_up(batch, tile_m)

    x_p = jnp.zeros((batch_pad, in_pad), jnp.float32).at[:batch, :in_size].set(x)

    grid = (batch_pad // tile_m,)

    def full_spec(shape):
        # Constant block index -> DMA'd into VMEM once, resident across grid.
        return pl.BlockSpec(shape, lambda i: (0, 0))

    in_specs = [pl.BlockSpec((tile_m, in_pad), lambda i: (i, 0))]
    flat_args = [x_p]
    for w, b in prepped:
        in_specs.append(full_spec(w.shape))
        in_specs.append(full_spec(b.shape))
        flat_args.extend([w, b])

    out = pl.pallas_call(
        _mlp_kernel,
        out_shape=jax.ShapeDtypeStruct((batch_pad, out_pad), jnp.float32),
        grid=grid,
        in_specs=in_specs,
        out_specs=pl.BlockSpec((tile_m, out_pad), lambda i: (i, 0)),
        compiler_params=pltpu.CompilerParams(
            dimension_semantics=("parallel",)),
    )(*flat_args)

    return out[:batch, :num_classes]


def reference_forward(x, params):
    """Same numerics as the kernel (bf16 matmul inputs, f32 accumulation)."""
    h = x
    for i, (w, b) in enumerate(params):
        h = jnp.dot(h.astype(jnp.bfloat16), w.T.astype(jnp.bfloat16),
                    preferred_element_type=jnp.float32) + b
        if i < len(params) - 1:
            h = jnp.maximum(h, 0.0)
    return h


if __name__ == "__main__":
    in_size = 32
    num_classes = 10
    batch = 8

    key = jax.random.PRNGKey(0)
    key, kx = jax.random.split(key)
    x = jax.random.normal(kx, (batch, in_size), jnp.float32)

    params, dims = init_params(key, in_size, num_classes)
    prepped, _ = prepare_params(params, dims)

    out = neural_net_forward(x, prepped, num_classes)
    out = jax.block_until_ready(out)

    ref = reference_forward(x, params)
    assert out.shape == (batch, num_classes)
    assert jnp.allclose(out, ref, atol=2e-2, rtol=2e-2), "mismatch vs reference"

    print("KERNEL_OK")
</pallas_src>

<mosaic_0001>
module attributes {stable_mosaic.version = 11 : i64} {
  func.func @_mlp_kernel(%arg0: i32, %arg1: memref<8x128xf32, #tpu.memory_space<vmem>>, %arg2: memref<128x512xbf16, #tpu.memory_space<vmem>>, %arg3: memref<1x512xf32, #tpu.memory_space<vmem>>, %arg4: memref<512x256xbf16, #tpu.memory_space<vmem>>, %arg5: memref<1x256xf32, #tpu.memory_space<vmem>>, %arg6: memref<256x256xbf16, #tpu.memory_space<vmem>>, %arg7: memref<1x256xf32, #tpu.memory_space<vmem>>, %arg8: memref<256x128xbf16, #tpu.memory_space<vmem>>, %arg9: memref<1x128xf32, #tpu.memory_space<vmem>>, %arg10: memref<128x128xbf16, #tpu.memory_space<vmem>>, %arg11: memref<1x128xf32, #tpu.memory_space<vmem>>, %arg12: memref<8x128xf32, #tpu.memory_space<vmem>>) attributes {dimension_semantics = [#tpu.dimension_semantics<parallel>], iteration_bounds = array<i64: 1>, scalar_prefetch = 0 : i64, scratch_operands = 0 : i64, tpu.core_type = #tpu.core_type<tc>, window_params = [{transform_indices = @transform_0, window_bounds = array<i64: 8, 128>}, {pipeline_mode = #tpu.pipeline_mode<synchronous>, transform_indices = @transform_1, window_bounds = array<i64: 128, 512>}, {pipeline_mode = #tpu.pipeline_mode<synchronous>, transform_indices = @transform_2, window_bounds = array<i64: 1, 512>}, {pipeline_mode = #tpu.pipeline_mode<synchronous>, transform_indices = @transform_3, window_bounds = array<i64: 512, 256>}, {pipeline_mode = #tpu.pipeline_mode<synchronous>, transform_indices = @transform_4, window_bounds = array<i64: 1, 256>}, {pipeline_mode = #tpu.pipeline_mode<synchronous>, transform_indices = @transform_5, window_bounds = array<i64: 256, 256>}, {pipeline_mode = #tpu.pipeline_mode<synchronous>, transform_indices = @transform_6, window_bounds = array<i64: 1, 256>}, {pipeline_mode = #tpu.pipeline_mode<synchronous>, transform_indices = @transform_7, window_bounds = array<i64: 256, 128>}, {pipeline_mode = #tpu.pipeline_mode<synchronous>, transform_indices = @transform_8, window_bounds = array<i64: 1, 128>}, {pipeline_mode = #tpu.pipeline_mode<synchronous>, transform_indices = @transform_9, window_bounds = array<i64: 128, 128>}, {pipeline_mode = #tpu.pipeline_mode<synchronous>, transform_indices = @transform_10, window_bounds = array<i64: 1, 128>}, {transform_indices = @transform_11, window_bounds = array<i64: 8, 128>}]} {
    %c0 = arith.constant 0 : index
    %c0_0 = arith.constant 0 : index
    %0 = vector.load %arg1[%c0, %c0_0] : memref<8x128xf32, #tpu.memory_space<vmem>>, vector<8x128xf32>
    %1 = arith.truncf %0 : vector<8x128xf32> to vector<8x128xbf16>
    %c0_1 = arith.constant 0 : index
    %c0_2 = arith.constant 0 : index
    %2 = vector.load %arg2[%c0_1, %c0_2] : memref<128x512xbf16, #tpu.memory_space<vmem>>, vector<128x512xbf16>
    %cst = arith.constant dense<0.000000e+00> : vector<8x512xf32>
    %3 = tpu.matmul %1, %2, %cst {dimension_numbers = #tpu.dot_dimension_numbers<[1], [0], [0], [1], [0, 0, 1, 1], [], []>} : vector<8x128xbf16>, vector<128x512xbf16>, vector<8x512xf32> -> vector<8x512xf32>
    %c0_3 = arith.constant 0 : index
    %c0_4 = arith.constant 0 : index
    %4 = vector.load %arg3[%c0_3, %c0_4] : memref<1x512xf32, #tpu.memory_space<vmem>>, vector<1x512xf32>
    %5 = vector.broadcast %4 : vector<1x512xf32> to vector<8x512xf32>
    %6 = arith.addf %3, %5 : vector<8x512xf32>
    %cst_5 = arith.constant 0.000000e+00 : f32
    %7 = vector.broadcast %cst_5 : f32 to vector<8x512xf32>
    %8 = arith.maximumf %6, %7 : vector<8x512xf32>
    %9 = arith.truncf %8 : vector<8x512xf32> to vector<8x512xbf16>
    %c0_6 = arith.constant 0 : index
    %c0_7 = arith.constant 0 : index
    %10 = vector.load %arg4[%c0_6, %c0_7] : memref<512x256xbf16, #tpu.memory_space<vmem>>, vector<512x256xbf16>
    %cst_8 = arith.constant dense<0.000000e+00> : vector<8x256xf32>
    %11 = tpu.matmul %9, %10, %cst_8 {dimension_numbers = #tpu.dot_dimension_numbers<[1], [0], [0], [1], [0, 0, 1, 1], [], []>} : vector<8x512xbf16>, vector<512x256xbf16>, vector<8x256xf32> -> vector<8x256xf32>
    %c0_9 = arith.constant 0 : index
    %c0_10 = arith.constant 0 : index
    %12 = vector.load %arg5[%c0_9, %c0_10] : memref<1x256xf32, #tpu.memory_space<vmem>>, vector<1x256xf32>
    %13 = vector.broadcast %12 : vector<1x256xf32> to vector<8x256xf32>
    %14 = arith.addf %11, %13 : vector<8x256xf32>
    %cst_11 = arith.constant 0.000000e+00 : f32
    %15 = vector.broadcast %cst_11 : f32 to vector<8x256xf32>
    %16 = arith.maximumf %14, %15 : vector<8x256xf32>
    %17 = arith.truncf %16 : vector<8x256xf32> to vector<8x256xbf16>
    %c0_12 = arith.constant 0 : index
    %c0_13 = arith.constant 0 : index
    %18 = vector.load %arg6[%c0_12, %c0_13] : memref<256x256xbf16, #tpu.memory_space<vmem>>, vector<256x256xbf16>
    %cst_14 = arith.constant dense<0.000000e+00> : vector<8x256xf32>
    %19 = tpu.matmul %17, %18, %cst_14 {dimension_numbers = #tpu.dot_dimension_numbers<[1], [0], [0], [1], [0, 0, 1, 1], [], []>} : vector<8x256xbf16>, vector<256x256xbf16>, vector<8x256xf32> -> vector<8x256xf32>
    %c0_15 = arith.constant 0 : index
    %c0_16 = arith.constant 0 : index
    %20 = vector.load %arg7[%c0_15, %c0_16] : memref<1x256xf32, #tpu.memory_space<vmem>>, vector<1x256xf32>
    %21 = vector.broadcast %20 : vector<1x256xf32> to vector<8x256xf32>
    %22 = arith.addf %19, %21 : vector<8x256xf32>
    %cst_17 = arith.constant 0.000000e+00 : f32
    %23 = vector.broadcast %cst_17 : f32 to vector<8x256xf32>
    %24 = arith.maximumf %22, %23 : vector<8x256xf32>
    %25 = arith.truncf %24 : vector<8x256xf32> to vector<8x256xbf16>
    %c0_18 = arith.constant 0 : index
    %c0_19 = arith.constant 0 : index
    %26 = vector.load %arg8[%c0_18, %c0_19] : memref<256x128xbf16, #tpu.memory_space<vmem>>, vector<256x128xbf16>
    %cst_20 = arith.constant dense<0.000000e+00> : vector<8x128xf32>
    %27 = tpu.matmul %25, %26, %cst_20 {dimension_numbers = #tpu.dot_dimension_numbers<[1], [0], [0], [1], [0, 0, 1, 1], [], []>} : vector<8x256xbf16>, vector<256x128xbf16>, vector<8x128xf32> -> vector<8x128xf32>
    %c0_21 = arith.constant 0 : index
    %c0_22 = arith.constant 0 : index
    %28 = vector.load %arg9[%c0_21, %c0_22] : memref<1x128xf32, #tpu.memory_space<vmem>>, vector<1x128xf32>
    %29 = vector.broadcast %28 : vector<1x128xf32> to vector<8x128xf32>
    %30 = arith.addf %27, %29 : vector<8x128xf32>
    %cst_23 = arith.constant 0.000000e+00 : f32
    %31 = vector.broadcast %cst_23 : f32 to vector<8x128xf32>
    %32 = arith.maximumf %30, %31 : vector<8x128xf32>
    %33 = arith.truncf %32 : vector<8x128xf32> to vector<8x128xbf16>
    %c0_24 = arith.constant 0 : index
    %c0_25 = arith.constant 0 : index
    %34 = vector.load %arg10[%c0_24, %c0_25] : memref<128x128xbf16, #tpu.memory_space<vmem>>, vector<128x128xbf16>
    %cst_26 = arith.constant dense<0.000000e+00> : vector<8x128xf32>
    %35 = tpu.matmul %33, %34, %cst_26 {dimension_numbers = #tpu.dot_dimension_numbers<[1], [0], [0], [1], [0, 0, 1, 1], [], []>} : vector<8x128xbf16>, vector<128x128xbf16>, vector<8x128xf32> -> vector<8x128xf32>
    %c0_27 = arith.constant 0 : index
    %c0_28 = arith.constant 0 : index
    %36 = vector.load %arg11[%c0_27, %c0_28] : memref<1x128xf32, #tpu.memory_space<vmem>>, vector<1x128xf32>
    %37 = vector.broadcast %36 : vector<1x128xf32> to vector<8x128xf32>
    %38 = arith.addf %35, %37 : vector<8x128xf32>
    %c0_29 = arith.constant 0 : index
    %c0_30 = arith.constant 0 : index
    %39 = vector.load %arg12[%c0_29, %c0_30] : memref<8x128xf32, #tpu.memory_space<vmem>>, vector<8x128xf32>
    tpu.vector_store %arg12[%c0_29, %c0_30], %38 {strides = array<i32>} : memref<8x128xf32, #tpu.memory_space<vmem>>, vector<8x128xf32>,
    return
  }
  func.func @transform_0(%arg0: i32) -> (i32, i32) {
    %c0_i32 = arith.constant 0 : i32
    %c0_i32_0 = arith.constant 0 : i32
    return %arg0, %c0_i32 : i32, i32
  }
  func.func @transform_1(%arg0: i32) -> (i32, i32) {
    %c0_i32 = arith.constant 0 : i32
    %c0_i32_0 = arith.constant 0 : i32
    %c0_i32_1 = arith.constant 0 : i32
    return %c0_i32, %c0_i32_0 : i32, i32
  }
  func.func @transform_2(%arg0: i32) -> (i32, i32) {
    %c0_i32 = arith.constant 0 : i32
    %c0_i32_0 = arith.constant 0 : i32
    %c0_i32_1 = arith.constant 0 : i32
    return %c0_i32, %c0_i32_0 : i32, i32
  }
  func.func @transform_3(%arg0: i32) -> (i32, i32) {
    %c0_i32 = arith.constant 0 : i32
    %c0_i32_0 = arith.constant 0 : i32
    %c0_i32_1 = arith.constant 0 : i32
    return %c0_i32, %c0_i32_0 : i32, i32
  }
  func.func @transform_4(%arg0: i32) -> (i32, i32) {
    %c0_i32 = arith.constant 0 : i32
    %c0_i32_0 = arith.constant 0 : i32
    %c0_i32_1 = arith.constant 0 : i32
    return %c0_i32, %c0_i32_0 : i32, i32
  }
  func.func @transform_5(%arg0: i32) -> (i32, i32) {
    %c0_i32 = arith.constant 0 : i32
    %c0_i32_0 = arith.constant 0 : i32
    %c0_i32_1 = arith.constant 0 : i32
    return %c0_i32, %c0_i32_0 : i32, i32
  }
  func.func @transform_6(%arg0: i32) -> (i32, i32) {
    %c0_i32 = arith.constant 0 : i32
    %c0_i32_0 = arith.constant 0 : i32
    %c0_i32_1 = arith.constant 0 : i32
    return %c0_i32, %c0_i32_0 : i32, i32
  }
  func.func @transform_7(%arg0: i32) -> (i32, i32) {
    %c0_i32 = arith.constant 0 : i32
    %c0_i32_0 = arith.constant 0 : i32
    %c0_i32_1 = arith.constant 0 : i32
    return %c0_i32, %c0_i32_0 : i32, i32
  }
  func.func @transform_8(%arg0: i32) -> (i32, i32) {
    %c0_i32 = arith.constant 0 : i32
    %c0_i32_0 = arith.constant 0 : i32
    %c0_i32_1 = arith.constant 0 : i32
    return %c0_i32, %c0_i32_0 : i32, i32
  }
  func.func @transform_9(%arg0: i32) -> (i32, i32) {
    %c0_i32 = arith.constant 0 : i32
    %c0_i32_0 = arith.constant 0 : i32
    %c0_i32_1 = arith.constant 0 : i32
    return %c0_i32, %c0_i32_0 : i32, i32
  }
  func.func @transform_10(%arg0: i32) -> (i32, i32) {
    %c0_i32 = arith.constant 0 : i32
    %c0_i32_0 = arith.constant 0 : i32
    %c0_i32_1 = arith.constant 0 : i32
    return %c0_i32, %c0_i32_0 : i32, i32
  }
  func.func @transform_11(%arg0: i32) -> (i32, i32) {
    %c0_i32 = arith.constant 0 : i32
    %c0_i32_0 = arith.constant 0 : i32
    return %arg0, %c0_i32 : i32, i32
  }
}

</mosaic_0001>

<llo_original>
// kernel: tpu_custom_call.1
$region0: #{tpu_custom_call.1}
  #allocation0 [shape = 'u32[]', space=smem, size = 0x4, offset = 0x4, fixed_abs, tag = 'smem constant byte address 0x4 - core index']
  #allocation1 [shape = 'u32[144,128]{1,0:T(1,128)}', space=vmem, size = 0x12000, scoped, tag = 'internal scratch']
  %s0 = inlined_call_operand.hbm [shape: f32[8,128], index: 0, kind: input, shape index: {}]
  %s1 = inlined_call_operand.hbm [shape: bf16[128,512], index: 1, kind: input, shape index: {}]
  %s2 = inlined_call_operand.vmem [shape: f32[1,512], index: 2, kind: input, shape index: {}]
  %s3 = inlined_call_operand.hbm [shape: bf16[512,256], index: 3, kind: input, shape index: {}]
  %s4 = inlined_call_operand.vmem [shape: f32[1,256], index: 4, kind: input, shape index: {}]
  %s5 = inlined_call_operand.hbm [shape: bf16[256,256], index: 5, kind: input, shape index: {}]
  %s6 = inlined_call_operand.vmem [shape: f32[1,256], index: 6, kind: input, shape index: {}]
  %s7 = inlined_call_operand.hbm [shape: bf16[256,128], index: 7, kind: input, shape index: {}]
  %s8 = inlined_call_operand.vmem [shape: f32[1,128], index: 8, kind: input, shape index: {}]
  %s9 = inlined_call_operand.hbm [shape: bf16[128,128], index: 9, kind: input, shape index: {}]
  %s10 = inlined_call_operand.vmem [shape: f32[1,128], index: 10, kind: input, shape index: {}]
  %s11 = inlined_call_operand.hbm [shape: f32[8,128], index: 11, kind: output, shape index: {}]
  %s12 = sld [smem:[#allocation0]]
  $region78: #{tpu_custom_call.1} parent=0
    _
  %s14 = ssub.s32 1, %s12
  %s15 = scalar_select 0, %s14, %s12
  $region1: #{tpu_custom_call.1} parent=0
    #allocation2 [shape = 'u8[4096]{0}', space=vmem, size = 0x1000, scoped, tag = 'input window, operand 0, single buffered']
    #allocation3 [shape = 's32[1]{0}', space=sflag, size = 0x4, scoped, tag = 'scoped memory for tpu_custom_call.1']
    #allocation4 [shape = 's32[1]{0}', space=sflag, size = 0x4, scoped, tag = 'scoped memory for tpu_custom_call.1']
    #allocation5 [shape = 'u8[131072]{0}', space=vmem, size = 0x20000, scoped, tag = 'input window, operand 1, single buffered']
    #allocation6 [shape = 's32[1]{0}', space=sflag, size = 0x4, scoped, tag = 'scoped memory for tpu_custom_call.1']
    #allocation7 [shape = 'u8[262144]{0}', space=vmem, size = 0x40000, scoped, tag = 'input window, operand 3, single buffered']
    #allocation8 [shape = 'u8[131072]{0}', space=vmem, size = 0x20000, scoped, tag = 'input window, operand 5, single buffered']
    #allocation9 [shape = 's32[1]{0}', space=sflag, size = 0x4, scoped, tag = 'scoped memory for tpu_custom_call.1']
    #allocation10 [shape = 'u8[65536]{0}', space=vmem, size = 0x10000, scoped, tag = 'input window, operand 7, single buffered']
    #allocation11 [shape = 'u8[32768]{0}', space=vmem, size = 0x8000, scoped, tag = 'input window, operand 9, single buffered']
    #allocation12 [shape = 's32[1]{0}', space=sflag, size = 0x4, scoped, tag = 'scoped memory for tpu_custom_call.1']
    #allocation13 [shape = 'u8[4096]{0}', space=vmem, size = 0x1000, scoped, tag = 'output window, operand 0, single buffered']
    %16 = vsyncpa [#allocation3], 0
    %17 = vsyncpa [#allocation6], 0
    %18 = vsyncpa [#allocation9], 0
    %19 = vsyncpa [#allocation12], 0
    %20 = vsyncpa [#allocation4], 0
    // Predicated region
    $region2: #{tpu_custom_call.1} parent=1 // pred_check
      _
    $region3: #{tpu_custom_call.1} parent=1 // pred_check_branch
      %22 = sbr.rel (0) target = $region5
    $region4: #{tpu_custom_call.1} parent=1 // pred_region
      %s24 = ssub.s32 128, 128
      %25 = vsyncadd [#allocation3], %s24
      %s27 = sshll.u32 [#allocation2], 4
      %s28 = int_to_ptr.vmem [resolvable:$true] %s27
      %30 = dma.hbm_to_vmem [thread:$0]  %s0, 128, %s28, [#allocation3]
    $region5: #{tpu_custom_call.1} parent=1 // pred_fallthru
      _
    // Predicated region
    $region6: #{tpu_custom_call.1} parent=1 // pred_check
      _
    $region7: #{tpu_custom_call.1} parent=1 // pred_check_branch
      %32 = sbr.rel (0) target = $region9
    $region8: #{tpu_custom_call.1} parent=1 // pred_region
      %s34 = ssub.s32 4096, 4096
      %35 = vsyncadd [#allocation6], %s34
      %s36 = sshll.u32 [#allocation5], 4
      %s37 = int_to_ptr.vmem [resolvable:$true] %s36
      %42 = dma.hbm_to_vmem [thread:$0]  %s1, 4096, %s37, [#allocation6], 256, 256, 16
    $region9: #{tpu_custom_call.1} parent=1 // pred_fallthru
      _
    // Predicated region
    $region10: #{tpu_custom_call.1} parent=1 // pred_check
      _
    $region11: #{tpu_custom_call.1} parent=1 // pred_check_branch
      %44 = sbr.rel (0) target = $region13
    $region12: #{tpu_custom_call.1} parent=1 // pred_region
      _
    $region13: #{tpu_custom_call.1} parent=1 // pred_fallthru
      _
    // Predicated region
    $region14: #{tpu_custom_call.1} parent=1 // pred_check
      _
    $region15: #{tpu_custom_call.1} parent=1 // pred_check_branch
      %46 = sbr.rel (0) target = $region17
    $region16: #{tpu_custom_call.1} parent=1 // pred_region
      %s48 = ssub.s32 8192, 8192
      %49 = vsyncadd [#allocation6], %s48
      %s50 = sshll.u32 [#allocation7], 4
      %s51 = int_to_ptr.vmem [resolvable:$true] %s50
      %56 = dma.hbm_to_vmem [thread:$0]  %s3, 8192, %s51, [#allocation6], 128, 128, 8
    $region17: #{tpu_custom_call.1} parent=1 // pred_fallthru
      _
    // Predicated region
    $region18: #{tpu_custom_call.1} parent=1 // pred_check
      _
    $region19: #{tpu_custom_call.1} parent=1 // pred_check_branch
      %58 = sbr.rel (0) target = $region21
    $region20: #{tpu_custom_call.1} parent=1 // pred_region
      _
    $region21: #{tpu_custom_call.1} parent=1 // pred_fallthru
      _
    // Predicated region
    $region22: #{tpu_custom_call.1} parent=1 // pred_check
      _
    $region23: #{tpu_custom_call.1} parent=1 // pred_check_branch
      %60 = sbr.rel (0) target = $region25
    $region24: #{tpu_custom_call.1} parent=1 // pred_region
      %s62 = ssub.s32 4096, 4096
      %63 = vsyncadd [#allocation9], %s62
      %s64 = sshll.u32 [#allocation8], 4
      %s65 = int_to_ptr.vmem [resolvable:$true] %s64
      %70 = dma.hbm_to_vmem [thread:$0]  %s5, 4096, %s65, [#allocation9], 128, 128, 8
    $region25: #{tpu_custom_call.1} parent=1 // pred_fallthru
      _
    // Predicated region
    $region26: #{tpu_custom_call.1} parent=1 // pred_check
      _
    $region27: #{tpu_custom_call.1} parent=1 // pred_check_branch
      %72 = sbr.rel (0) target = $region29
    $region28: #{tpu_custom_call.1} parent=1 // pred_region
      _
    $region29: #{tpu_custom_call.1} parent=1 // pred_fallthru
      _
    // Predicated region
    $region30: #{tpu_custom_call.1} parent=1 // pred_check
      _
    $region31: #{tpu_custom_call.1} parent=1 // pred_check_branch
      %74 = sbr.rel (0) target = $region33
    $region32: #{tpu_custom_call.1} parent=1 // pred_region
      %s76 = ssub.s32 2048, 2048
      %77 = vsyncadd [#allocation9], %s76
      %s78 = sshll.u32 [#allocation10], 4
      %s79 = int_to_ptr.vmem [resolvable:$true] %s78
      %84 = dma.hbm_to_vmem [thread:$0]  %s7, 2048, %s79, [#allocation9], 64, 64, 4
    $region33: #{tpu_custom_call.1} parent=1 // pred_fallthru
      _
    // Predicated region
    $region34: #{tpu_custom_call.1} parent=1 // pred_check
      _
    $region35: #{tpu_custom_call.1} parent=1 // pred_check_branch
      %86 = sbr.rel (0) target = $region37
    $region36: #{tpu_custom_call.1} parent=1 // pred_region
      _
    $region37: #{tpu_custom_call.1} parent=1 // pred_fallthru
      _
    // Predicated region
    $region38: #{tpu_custom_call.1} parent=1 // pred_check
      _
    $region39: #{tpu_custom_call.1} parent=1 // pred_check_branch
      %88 = sbr.rel (0) target = $region41
    $region40: #{tpu_custom_call.1} parent=1 // pred_region
      %s90 = ssub.s32 1024, 1024
      %91 = vsyncadd [#allocation12], %s90
      %s92 = sshll.u32 [#allocation11], 4
      %s93 = int_to_ptr.vmem [resolvable:$true] %s92
      %98 = dma.hbm_to_vmem [thread:$0]  %s9, 1024, %s93, [#allocation12], 64, 64, 4
    $region41: #{tpu_custom_call.1} parent=1 // pred_fallthru
      _
    // Predicated region
    $region42: #{tpu_custom_call.1} parent=1 // pred_check
      _
    $region43: #{tpu_custom_call.1} parent=1 // pred_check_branch
      %100 = sbr.rel (0) target = $region45
    $region44: #{tpu_custom_call.1} parent=1 // pred_region
      _
    $region45: #{tpu_custom_call.1} parent=1 // pred_fallthru
      _
    // Predicated region
    $region46: #{tpu_custom_call.1} parent=1 // pred_check
      _
    $region47: #{tpu_custom_call.1} parent=1 // pred_check_branch
      %102 = sbr.rel (0) target = $region49
    $region48: #{tpu_custom_call.1} parent=1 // pred_region
      %103 = dma.done [#allocation3], 128
    $region49: #{tpu_custom_call.1} parent=1 // pred_fallthru
      _
    // Predicated region
    $region50: #{tpu_custom_call.1} parent=1 // pred_check
      _
    $region51: #{tpu_custom_call.1} parent=1 // pred_check_branch
      %105 = sbr.rel (0) target = $region53
    $region52: #{tpu_custom_call.1} parent=1 // pred_region
      %106 = dma.done [#allocation6], 4096
    $region53: #{tpu_custom_call.1} parent=1 // pred_fallthru
      _
    // Predicated region
    $region54: #{tpu_custom_call.1} parent=1 // pred_check
      _
    $region55: #{tpu_custom_call.1} parent=1 // pred_check_branch
      %108 = sbr.rel (0) target = $region57
    $region56: #{tpu_custom_call.1} parent=1 // pred_region
      %109 = dma.done [#allocation6], 8192
    $region57: #{tpu_custom_call.1} parent=1 // pred_fallthru
      _
    // Predicated region
    $region58: #{tpu_custom_call.1} parent=1 // pred_check
      _
    $region59: #{tpu_custom_call.1} parent=1 // pred_check_branch
      %111 = sbr.rel (0) target = $region61
    $region60: #{tpu_custom_call.1} parent=1 // pred_region
      %112 = dma.done [#allocation9], 4096
    $region61: #{tpu_custom_call.1} parent=1 // pred_fallthru
      _
    // Predicated region
    $region62: #{tpu_custom_call.1} parent=1 // pred_check
      _
    $region63: #{tpu_custom_call.1} parent=1 // pred_check_branch
      %114 = sbr.rel (0) target = $region65
    $region64: #{tpu_custom_call.1} parent=1 // pred_region
      %115 = dma.done [#allocation9], 2048
    $region65: #{tpu_custom_call.1} parent=1 // pred_fallthru
      _
    // Predicated region
    $region66: #{tpu_custom_call.1} parent=1 // pred_check
      _
    $region67: #{tpu_custom_call.1} parent=1 // pred_check_branch
      %117 = sbr.rel (0) target = $region69
    $region68: #{tpu_custom_call.1} parent=1 // pred_region
      %118 = dma.done [#allocation12], 1024
    $region69: #{tpu_custom_call.1} parent=1 // pred_fallthru
      _
    %v120 = vld [vmem:[#allocation2] sm:$0xff]
    %v121 = vpack.c.bf16 %v120, %v120
    %v122 = vld [vmem:[#allocation5] sm:$0xff]
    %v123 = vld [vmem:[#allocation5 + $0x8] sm:$0xff]
    %v124 = vld [vmem:[#allocation5 + $0x10] sm:$0xff]
    %v125 = vld [vmem:[#allocation5 + $0x18] sm:$0xff]
    %v126 = vld [vmem:[#allocation5 + $0x20] sm:$0xff]
    %v127 = vld [vmem:[#allocation5 + $0x28] sm:$0xff]
    %v128 = vld [vmem:[#allocation5 + $0x30] sm:$0xff]
    %v129 = vld [vmem:[#allocation5 + $0x38] sm:$0xff]
    %v130 = vld [vmem:[#allocation5 + $0x40] sm:$0xff]
    %v131 = vld [vmem:[#allocation5 + $0x48] sm:$0xff]
    %v132 = vld [vmem:[#allocation5 + $0x50] sm:$0xff]
    %v133 = vld [vmem:[#allocation5 + $0x58] sm:$0xff]
    %v134 = vld [vmem:[#allocation5 + $0x60] sm:$0xff]
    %v135 = vld [vmem:[#allocation5 + $0x68] sm:$0xff]
    %v136 = vld [vmem:[#allocation5 + $0x70] sm:$0xff]
    %v137 = vld [vmem:[#allocation5 + $0x78] sm:$0xff]
    %v138 = vld [vmem:[#allocation5 + $0x80] sm:$0xff]
    %v139 = vld [vmem:[#allocation5 + $0x88] sm:$0xff]
    %v140 = vld [vmem:[#allocation5 + $0x90] sm:$0xff]
    %v141 = vld [vmem:[#allocation5 + $0x98] sm:$0xff]
    %v142 = vld [vmem:[#allocation5 + $0xa0] sm:$0xff]
    %v143 = vld [vmem:[#allocation5 + $0xa8] sm:$0xff]
    %v144 = vld [vmem:[#allocation5 + $0xb0] sm:$0xff]
    %v145 = vld [vmem:[#allocation5 + $0xb8] sm:$0xff]
    %v146 = vld [vmem:[#allocation5 + $0xc0] sm:$0xff]
    %v147 = vld [vmem:[#allocation5 + $0xc8] sm:$0xff]
    %v148 = vld [vmem:[#allocation5 + $0xd0] sm:$0xff]
    %v149 = vld [vmem:[#allocation5 + $0xd8] sm:$0xff]
    %v150 = vld [vmem:[#allocation5 + $0xe0] sm:$0xff]
    %v151 = vld [vmem:[#allocation5 + $0xe8] sm:$0xff]
    %v152 = vld [vmem:[#allocation5 + $0xf0] sm:$0xff]
    %v153 = vld [vmem:[#allocation5 + $0xf8] sm:$0xff]
    %v154 = vld [vmem:[%s2] sm:$0xf]
    %v156 = vlaneseq
    %v157 = vshrl.u32 %v156, 7
    %v158 = vsub.s32 0, %v157
    %v159 = vrot.slane %v154, %v158
    %v160 = vlaneseq
    %v161 = vshrl.u32 %v160, 7
    %v162 = vsub.s32 1, %v161
    %v163 = vrot.slane %v154, %v162
    %v164 = vlaneseq
    %v165 = vshrl.u32 %v164, 7
    %v166 = vsub.s32 2, %v165
    %v167 = vrot.slane %v154, %v166
    %v168 = vlaneseq
    %v169 = vshrl.u32 %v168, 7
    %v170 = vsub.s32 3, %v169
    %v171 = vrot.slane %v154, %v170
    %v208 = vunpack.c.l.b16 %v122
    %v209 = vunpack.c.h.b16 %v122
    %v210 = vunpack.c.l.b16 %v123
    %v211 = vunpack.c.h.b16 %v123
    %v212 = vunpack.c.l.b16 %v124
    %v213 = vunpack.c.h.b16 %v124
    %v214 = vunpack.c.l.b16 %v125
    %v215 = vunpack.c.h.b16 %v125
    %v216 = vunpack.c.l.b16 %v126
    %v217 = vunpack.c.h.b16 %v126
    %v218 = vunpack.c.l.b16 %v127
    %v219 = vunpack.c.h.b16 %v127
    %v220 = vunpack.c.l.b16 %v128
    %v221 = vunpack.c.h.b16 %v128
    %v222 = vunpack.c.l.b16 %v129
    %v223 = vunpack.c.h.b16 %v129
    %v224 = vunpack.c.l.b16 %v130
    %v225 = vunpack.c.h.b16 %v130
    %v226 = vunpack.c.l.b16 %v131
    %v227 = vunpack.c.h.b16 %v131
    %v228 = vunpack.c.l.b16 %v132
    %v229 = vunpack.c.h.b16 %v132
    %v230 = vunpack.c.l.b16 %v133
    %v231 = vunpack.c.h.b16 %v133
    %v232 = vunpack.c.l.b16 %v134
    %v233 = vunpack.c.h.b16 %v134
    %v234 = vunpack.c.l.b16 %v135
    %v235 = vunpack.c.h.b16 %v135
    %v236 = vunpack.c.l.b16 %v136
    %v237 = vunpack.c.h.b16 %v136
    %v238 = vunpack.c.l.b16 %v137
    %v239 = vunpack.c.h.b16 %v137
    %v240 = vunpack.c.l.b16 %v138
    %v241 = vunpack.c.h.b16 %v138
    %v242 = vunpack.c.l.b16 %v139
    %v243 = vunpack.c.h.b16 %v139
    %v244 = vunpack.c.l.b16 %v140
    %v245 = vunpack.c.h.b16 %v140
    %v246 = vunpack.c.l.b16 %v141
    %v247 = vunpack.c.h.b16 %v141
    %v248 = vunpack.c.l.b16 %v142
    %v249 = vunpack.c.h.b16 %v142
    %v250 = vunpack.c.l.b16 %v143
    %v251 = vunpack.c.h.b16 %v143
    %v252 = vunpack.c.l.b16 %v144
    %v253 = vunpack.c.h.b16 %v144
    %v254 = vunpack.c.l.b16 %v145
    %v255 = vunpack.c.h.b16 %v145
    %v256 = vunpack.c.l.b16 %v146
    %v257 = vunpack.c.h.b16 %v146
    %v258 = vunpack.c.l.b16 %v147
    %v259 = vunpack.c.h.b16 %v147
    %v260 = vunpack.c.l.b16 %v148
    %v261 = vunpack.c.h.b16 %v148
    %v262 = vunpack.c.l.b16 %v149
    %v263 = vunpack.c.h.b16 %v149
    %v264 = vunpack.c.l.b16 %v150
    %v265 = vunpack.c.h.b16 %v150
    %v266 = vunpack.c.l.b16 %v151
    %v267 = vunpack.c.h.b16 %v151
    %v268 = vunpack.c.l.b16 %v152
    %v269 = vunpack.c.h.b16 %v152
    %v270 = vunpack.c.l.b16 %v153
    %v271 = vunpack.c.h.b16 %v153
    %v272 = vpack.c.b16 %v212, %v208
    %v273 = vpack.c.b16 %v213, %v209
    %v274 = vpack.c.b16 %v214, %v210
    %v275 = vpack.c.b16 %v215, %v211
    %v276 = vpack.c.b16 %v220, %v216
    %v277 = vpack.c.b16 %v221, %v217
    %v278 = vpack.c.b16 %v222, %v218
    %v279 = vpack.c.b16 %v223, %v219
    %v280 = vpack.c.b16 %v228, %v224
    %v281 = vpack.c.b16 %v229, %v225
    %v282 = vpack.c.b16 %v230, %v226
    %v283 = vpack.c.b16 %v231, %v227
    %v284 = vpack.c.b16 %v236, %v232
    %v285 = vpack.c.b16 %v237, %v233
    %v286 = vpack.c.b16 %v238, %v234
    %v287 = vpack.c.b16 %v239, %v235
    %v288 = vpack.c.b16 %v244, %v240
    %v289 = vpack.c.b16 %v245, %v241
    %v290 = vpack.c.b16 %v246, %v242
    %v291 = vpack.c.b16 %v247, %v243
    %v292 = vpack.c.b16 %v252, %v248
    %v293 = vpack.c.b16 %v253, %v249
    %v294 = vpack.c.b16 %v254, %v250
    %v295 = vpack.c.b16 %v255, %v251
    %v296 = vpack.c.b16 %v260, %v256
    %v297 = vpack.c.b16 %v261, %v257
    %v298 = vpack.c.b16 %v262, %v258
    %v299 = vpack.c.b16 %v263, %v259
    %v300 = vpack.c.b16 %v268, %v264
    %v301 = vpack.c.b16 %v269, %v265
    %v302 = vpack.c.b16 %v270, %v266
    %v303 = vpack.c.b16 %v271, %v267
    %336 = vmatprep.subr.bf16.mxu0 %v273
    %337 = vmatpush1.bf16.msra.mxu0 %v272
    %338 = vmatprep.subr.bf16.mxu0 %v277
    %339 = vmatpush1.bf16.msra.mxu0 %v276
    %340 = vmatprep.subr.bf16.mxu0 %v281
    %341 = vmatpush1.bf16.msra.mxu0 %v280
    %342 = vmatprep.subr.bf16.mxu0 %v285
    %343 = vmatpush1.bf16.msra.mxu0 %v284
    %344 = vmatprep.subr.bf16.mxu0 %v289
    %345 = vmatpush1.bf16.msra.mxu0 %v288
    %346 = vmatprep.subr.bf16.mxu0 %v293
    %347 = vmatpush1.bf16.msra.mxu0 %v292
    %348 = vmatprep.subr.bf16.mxu0 %v297
    %349 = vmatpush1.bf16.msra.mxu0 %v296
    %350 = vmatprep.subr.bf16.mxu0 %v301
    %351 = vmatpush1.bf16.msra.mxu0 %v300
    %352 = vmatprep.subr.bf16.mxu0 0
    %353 = vmatpush1.bf16.msra.mxu0 0
    %354 = vmatprep.subr.bf16.mxu0 0
    %355 = vmatpush1.bf16.msra.mxu0 0
    %356 = vmatprep.subr.bf16.mxu0 0
    %357 = vmatpush1.bf16.msra.mxu0 0
    %358 = vmatprep.subr.bf16.mxu0 0
    %359 = vmatpush1.bf16.msra.mxu0 0
    %360 = vmatprep.subr.bf16.mxu0 0
    %361 = vmatpush1.bf16.msra.mxu0 0
    %362 = vmatprep.subr.bf16.mxu0 0
    %363 = vmatpush1.bf16.msra.mxu0 0
    %364 = vmatprep.subr.bf16.mxu0 0
    %365 = vmatpush1.bf16.msra.mxu0 0
    %366 = vmatprep.subr.bf16.mxu0 0
    %367 = vmatpush1.bf16.msra.mxu0 0
    %368 = vmatprep.mubr.bf16.mxu0 0
    %369 = vmatmul.mubr.bf16.gmra.mrb[0].mxu0 %v121
    %v370 = vpop.f32.mrb[0].mxu0
    %v371 = vadd.f32 %v159, %v370
    %v372 = vpop.f32.mrb[0].mxu0
    %v373 = vadd.f32 %v163, %v372
    %v374 = vpop.f32.mrb[0].mxu0
    %v375 = vpop.f32.mrb[0].mxu0
    %376 = vdwg.mxu0
    %377 = vmatprep.subr.bf16.mxu0 %v275
    %378 = vmatpush1.bf16.msra.mxu0 %v274
    %379 = vmatprep.subr.bf16.mxu0 %v279
    %380 = vmatpush1.bf16.msra.mxu0 %v278
    %381 = vmatprep.subr.bf16.mxu0 %v283
    %382 = vmatpush1.bf16.msra.mxu0 %v282
    %383 = vmatprep.subr.bf16.mxu0 %v287
    %384 = vmatpush1.bf16.msra.mxu0 %v286
    %385 = vmatprep.subr.bf16.mxu0 %v291
    %386 = vmatpush1.bf16.msra.mxu0 %v290
    %387 = vmatprep.subr.bf16.mxu0 %v295
    %388 = vmatpush1.bf16.msra.mxu0 %v294
    %389 = vmatprep.subr.bf16.mxu0 %v299
    %390 = vmatpush1.bf16.msra.mxu0 %v298
    %391 = vmatprep.subr.bf16.mxu0 %v303
    %392 = vmatpush1.bf16.msra.mxu0 %v302
    %393 = vmatprep.subr.bf16.mxu0 0
    %394 = vmatpush1.bf16.msra.mxu0 0
    %395 = vmatprep.subr.bf16.mxu0 0
    %396 = vmatpush1.bf16.msra.mxu0 0
    %397 = vmatprep.subr.bf16.mxu0 0
    %398 = vmatpush1.bf16.msra.mxu0 0
    %399 = vmatprep.subr.bf16.mxu0 0
    %400 = vmatpush1.bf16.msra.mxu0 0
    %401 = vmatprep.subr.bf16.mxu0 0
    %402 = vmatpush1.bf16.msra.mxu0 0
    %403 = vmatprep.subr.bf16.mxu0 0
    %404 = vmatpush1.bf16.msra.mxu0 0
    %405 = vmatprep.subr.bf16.mxu0 0
    %406 = vmatpush1.bf16.msra.mxu0 0
    %407 = vmatprep.subr.bf16.mxu0 0
    %408 = vmatpush1.bf16.msra.mxu0 0
    %409 = vmatprep.mubr.bf16.mxu0 0
    %410 = vmatmul.mubr.bf16.gmra.mrb[0].mxu0 %v121
    %v411 = vpop.f32.mrb[0].mxu0
    %v412 = vadd.f32 %v167, %v411
    %v413 = vpop.f32.mrb[0].mxu0
    %v414 = vadd.f32 %v171, %v413
    %v415 = vpop.f32.mrb[0].mxu0
    %v416 = vpop.f32.mrb[0].mxu0
    %417 = vdwg.mxu0
    %v418 = vmax.f32 %v371, 0.0
    %v419 = vmax.f32 %v373, 0.0
    %v420 = vmax.f32 %v412, 0.0
    %v421 = vmax.f32 %v414, 0.0
    %v422 = vpack.c.bf16 %v418, %v418
    %v423 = vpack.c.bf16 %v419, %v419
    %v424 = vpack.c.bf16 %v420, %v420
    %v425 = vpack.c.bf16 %v421, %v421
    %v426 = vld [vmem:[#allocation7] sm:$0xff]
    %v427 = vld [vmem:[#allocation7 + $0x8] sm:$0xff]
    %v428 = vld [vmem:[#allocation7 + $0x10] sm:$0xff]
    %v429 = vld [vmem:[#allocation7 + $0x18] sm:$0xff]
    %v430 = vld [vmem:[#allocation7 + $0x20] sm:$0xff]
    %v431 = vld [vmem:[#allocation7 + $0x28] sm:$0xff]
    %v432 = vld [vmem:[#allocation7 + $0x30] sm:$0xff]
    %v433 = vld [vmem:[#allocation7 + $0x38] sm:$0xff]
    %v434 = vld [vmem:[#allocation7 + $0x40] sm:$0xff]
    %v435 = vld [vmem:[#allocation7 + $0x48] sm:$0xff]
    %v436 = vld [vmem:[#allocation7 + $0x50] sm:$0xff]
    %v437 = vld [vmem:[#allocation7 + $0x58] sm:$0xff]
    %v438 = vld [vmem:[#allocation7 + $0x60] sm:$0xff]
    %v439 = vld [vmem:[#allocation7 + $0x68] sm:$0xff]
    %v440 = vld [vmem:[#allocation7 + $0x70] sm:$0xff]
    %v441 = vld [vmem:[#allocation7 + $0x78] sm:$0xff]
    %v442 = vld [vmem:[#allocation7 + $0x80] sm:$0xff]
    %v443 = vld [vmem:[#allocation7 + $0x88] sm:$0xff]
    %v444 = vld [vmem:[#allocation7 + $0x90] sm:$0xff]
    %v445 = vld [vmem:[#allocation7 + $0x98] sm:$0xff]
    %v446 = vld [vmem:[#allocation7 + $0xa0] sm:$0xff]
    %v447 = vld [vmem:[#allocation7 + $0xa8] sm:$0xff]
    %v448 = vld [vmem:[#allocation7 + $0xb0] sm:$0xff]
    %v449 = vld [vmem:[#allocation7 + $0xb8] sm:$0xff]
    %v450 = vld [vmem:[#allocation7 + $0xc0] sm:$0xff]
    %v451 = vld [vmem:[#allocation7 + $0xc8] sm:$0xff]
    %v452 = vld [vmem:[#allocation7 + $0xd0] sm:$0xff]
    %v453 = vld [vmem:[#allocation7 + $0xd8] sm:$0xff]
    %v454 = vld [vmem:[#allocation7 + $0xe0] sm:$0xff]
    %v455 = vld [vmem:[#allocation7 + $0xe8] sm:$0xff]
    %v456 = vld [vmem:[#allocation7 + $0xf0] sm:$0xff]
    %v457 = vld [vmem:[#allocation7 + $0xf8] sm:$0xff]
    %v458 = vld [vmem:[#allocation7 + $0x100] sm:$0xff]
    %v459 = vld [vmem:[#allocation7 + $0x108] sm:$0xff]
    %v460 = vld [vmem:[#allocation7 + $0x110] sm:$0xff]
    %v461 = vld [vmem:[#allocation7 + $0x118] sm:$0xff]
    %v462 = vld [vmem:[#allocation7 + $0x120] sm:$0xff]
    %v463 = vld [vmem:[#allocation7 + $0x128] sm:$0xff]
    %v464 = vld [vmem:[#allocation7 + $0x130] sm:$0xff]
    %v465 = vld [vmem:[#allocation7 + $0x138] sm:$0xff]
    %v466 = vld [vmem:[#allocation7 + $0x140] sm:$0xff]
    %v467 = vld [vmem:[#allocation7 + $0x148] sm:$0xff]
    %v468 = vld [vmem:[#allocation7 + $0x150] sm:$0xff]
    %v469 = vld [vmem:[#allocation7 + $0x158] sm:$0xff]
    %v470 = vld [vmem:[#allocation7 + $0x160] sm:$0xff]
    %v471 = vld [vmem:[#allocation7 + $0x168] sm:$0xff]
    %v472 = vld [vmem:[#allocation7 + $0x170] sm:$0xff]
    %v473 = vld [vmem:[#allocation7 + $0x178] sm:$0xff]
    %v474 = vld [vmem:[#allocation7 + $0x180] sm:$0xff]
    %v475 = vld [vmem:[#allocation7 + $0x188] sm:$0xff]
    %v476 = vld [vmem:[#allocation7 + $0x190] sm:$0xff]
    %v477 = vld [vmem:[#allocation7 + $0x198] sm:$0xff]
    %v478 = vld [vmem:[#allocation7 + $0x1a0] sm:$0xff]
    %v479 = vld [vmem:[#allocation7 + $0x1a8] sm:$0xff]
    %v480 = vld [vmem:[#allocation7 + $0x1b0] sm:$0xff]
    %v481 = vld [vmem:[#allocation7 + $0x1b8] sm:$0xff]
    %v482 = vld [vmem:[#allocation7 + $0x1c0] sm:$0xff]
    %v483 = vld [vmem:[#allocation7 + $0x1c8] sm:$0xff]
    %v484 = vld [vmem:[#allocation7 + $0x1d0] sm:$0xff]
    %v485 = vld [vmem:[#allocation7 + $0x1d8] sm:$0xff]
    %v486 = vld [vmem:[#allocation7 + $0x1e0] sm:$0xff]
    %v487 = vld [vmem:[#allocation7 + $0x1e8] sm:$0xff]
    %v488 = vld [vmem:[#allocation7 + $0x1f0] sm:$0xff]
    %v489 = vld [vmem:[#allocation7 + $0x1f8] sm:$0xff]
    %v490 = vld [vmem:[%s4] sm:$0x3]
    %v492 = vlaneseq
    %v493 = vshrl.u32 %v492, 7
    %v494 = vsub.s32 0, %v493
    %v495 = vrot.slane %v490, %v494
    %v496 = vlaneseq
    %v497 = vshrl.u32 %v496, 7
    %v498 = vsub.s32 1, %v497
    %v499 = vrot.slane %v490, %v498
    %v566 = vunpack.c.l.b16 %v426
    %v567 = vunpack.c.h.b16 %v426
    %v568 = vunpack.c.l.b16 %v427
    %v569 = vunpack.c.h.b16 %v427
    %v570 = vunpack.c.l.b16 %v428
    %v571 = vunpack.c.h.b16 %v428
    %v572 = vunpack.c.l.b16 %v429
    %v573 = vunpack.c.h.b16 %v429
    %v574 = vunpack.c.l.b16 %v430
    %v575 = vunpack.c.h.b16 %v430
    %v576 = vunpack.c.l.b16 %v431
    %v577 = vunpack.c.h.b16 %v431
    %v578 = vunpack.c.l.b16 %v432
    %v579 = vunpack.c.h.b16 %v432
    %v580 = vunpack.c.l.b16 %v433
    %v581 = vunpack.c.h.b16 %v433
    %v582 = vunpack.c.l.b16 %v434
    %v583 = vunpack.c.h.b16 %v434
    %v584 = vunpack.c.l.b16 %v435
    %v585 = vunpack.c.h.b16 %v435
    %v586 = vunpack.c.l.b16 %v436
    %v587 = vunpack.c.h.b16 %v436
    %v588 = vunpack.c.l.b16 %v437
    %v589 = vunpack.c.h.b16 %v437
    %v590 = vunpack.c.l.b16 %v438
    %v591 = vunpack.c.h.b16 %v438
    %v592 = vunpack.c.l.b16 %v439
    %v593 = vunpack.c.h.b16 %v439
    %v594 = vunpack.c.l.b16 %v440
    %v595 = vunpack.c.h.b16 %v440
    %v596 = vunpack.c.l.b16 %v441
    %v597 = vunpack.c.h.b16 %v441
    %v598 = vunpack.c.l.b16 %v442
    %v599 = vunpack.c.h.b16 %v442
    %v600 = vunpack.c.l.b16 %v443
    %v601 = vunpack.c.h.b16 %v443
    %v602 = vunpack.c.l.b16 %v444
    %v603 = vunpack.c.h.b16 %v444
    %v604 = vunpack.c.l.b16 %v445
    %v605 = vunpack.c.h.b16 %v445
    %v606 = vunpack.c.l.b16 %v446
    %v607 = vunpack.c.h.b16 %v446
    %v608 = vunpack.c.l.b16 %v447
    %v609 = vunpack.c.h.b16 %v447
    %v610 = vunpack.c.l.b16 %v448
    %v611 = vunpack.c.h.b16 %v448
    %v612 = vunpack.c.l.b16 %v449
    %v613 = vunpack.c.h.b16 %v449
    %v614 = vunpack.c.l.b16 %v450
    %v615 = vunpack.c.h.b16 %v450
    %v616 = vunpack.c.l.b16 %v451
    %v617 = vunpack.c.h.b16 %v451
    %v618 = vunpack.c.l.b16 %v452
    %v619 = vunpack.c.h.b16 %v452
    %v620 = vunpack.c.l.b16 %v453
    %v621 = vunpack.c.h.b16 %v453
    %v622 = vunpack.c.l.b16 %v454
    %v623 = vunpack.c.h.b16 %v454
    %v624 = vunpack.c.l.b16 %v455
    %v625 = vunpack.c.h.b16 %v455
    %v626 = vunpack.c.l.b16 %v456
    %v627 = vunpack.c.h.b16 %v456
    %v628 = vunpack.c.l.b16 %v457
    %v629 = vunpack.c.h.b16 %v457
    %v630 = vunpack.c.l.b16 %v458
    %v631 = vunpack.c.h.b16 %v458
    %v632 = vunpack.c.l.b16 %v459
    %v633 = vunpack.c.h.b16 %v459
    %v634 = vunpack.c.l.b16 %v460
    %v635 = vunpack.c.h.b16 %v460
    %v636 = vunpack.c.l.b16 %v461
    %v637 = vunpack.c.h.b16 %v461
    %v638 = vunpack.c.l.b16 %v462
    %v639 = vunpack.c.h.b16 %v462
    %v640 = vunpack.c.l.b16 %v463
    %v641 = vunpack.c.h.b16 %v463
    %v642 = vunpack.c.l.b16 %v464
    %v643 = vunpack.c.h.b16 %v464
    %v644 = vunpack.c.l.b16 %v465
    %v645 = vunpack.c.h.b16 %v465
    %v646 = vunpack.c.l.b16 %v466
    %v647 = vunpack.c.h.b16 %v466
    %v648 = vunpack.c.l.b16 %v467
    %v649 = vunpack.c.h.b16 %v467
    %v650 = vunpack.c.l.b16 %v468
    %v651 = vunpack.c.h.b16 %v468
    %v652 = vunpack.c.l.b16 %v469
    %v653 = vunpack.c.h.b16 %v469
    %v654 = vunpack.c.l.b16 %v470
    %v655 = vunpack.c.h.b16 %v470
    %v656 = vunpack.c.l.b16 %v471
    %v657 = vunpack.c.h.b16 %v471
    %v658 = vunpack.c.l.b16 %v472
    %v659 = vunpack.c.h.b16 %v472
    %v660 = vunpack.c.l.b16 %v473
    %v661 = vunpack.c.h.b16 %v473
    %v662 = vunpack.c.l.b16 %v474
    %v663 = vunpack.c.h.b16 %v474
    %v664 = vunpack.c.l.b16 %v475
    %v665 = vunpack.c.h.b16 %v475
    %v666 = vunpack.c.l.b16 %v476
    %v667 = vunpack.c.h.b16 %v476
    %v668 = vunpack.c.l.b16 %v477
    %v669 = vunpack.c.h.b16 %v477
    %v670 = vunpack.c.l.b16 %v478
    %v671 = vunpack.c.h.b16 %v478
    %v672 = vunpack.c.l.b16 %v479
    %v673 = vunpack.c.h.b16 %v479
    %v674 = vunpack.c.l.b16 %v480
    %v675 = vunpack.c.h.b16 %v480
    %v676 = vunpack.c.l.b16 %v481
    %v677 = vunpack.c.h.b16 %v481
    %v678 = vunpack.c.l.b16 %v482
    %v679 = vunpack.c.h.b16 %v482
    %v680 = vunpack.c.l.b16 %v483
    %v681 = vunpack.c.h.b16 %v483
    %v682 = vunpack.c.l.b16 %v484
    %v683 = vunpack.c.h.b16 %v484
    %v684 = vunpack.c.l.b16 %v485
    %v685 = vunpack.c.h.b16 %v485
    %v686 = vunpack.c.l.b16 %v486
    %v687 = vunpack.c.h.b16 %v486
    %v688 = vunpack.c.l.b16 %v487
    %v689 = vunpack.c.h.b16 %v487
    %v690 = vunpack.c.l.b16 %v488
    %v691 = vunpack.c.h.b16 %v488
    %v692 = vunpack.c.l.b16 %v489
    %v693 = vunpack.c.h.b16 %v489
    %v694 = vpack.c.b16 %v568, %v566
    %v695 = vpack.c.b16 %v569, %v567
    %v696 = vpack.c.b16 %v572, %v570
    %v697 = vpack.c.b16 %v573, %v571
    %v698 = vpack.c.b16 %v576, %v574
    %v699 = vpack.c.b16 %v577, %v575
    %v700 = vpack.c.b16 %v580, %v578
    %v701 = vpack.c.b16 %v581, %v579
    %v702 = vpack.c.b16 %v584, %v582
    %v703 = vpack.c.b16 %v585, %v583
    %v704 = vpack.c.b16 %v588, %v586
    %v705 = vpack.c.b16 %v589, %v587
    %v706 = vpack.c.b16 %v592, %v590
    %v707 = vpack.c.b16 %v593, %v591
    %v708 = vpack.c.b16 %v596, %v594
    %v709 = vpack.c.b16 %v597, %v595
    %v710 = vpack.c.b16 %v600, %v598
    %v711 = vpack.c.b16 %v601, %v599
    %v712 = vpack.c.b16 %v604, %v602
    %v713 = vpack.c.b16 %v605, %v603
    %v714 = vpack.c.b16 %v608, %v606
    %v715 = vpack.c.b16 %v609, %v607
    %v716 = vpack.c.b16 %v612, %v610
    %v717 = vpack.c.b16 %v613, %v611
    %v718 = vpack.c.b16 %v616, %v614
    %v719 = vpack.c.b16 %v617, %v615
    %v720 = vpack.c.b16 %v620, %v618
    %v721 = vpack.c.b16 %v621, %v619
    %v722 = vpack.c.b16 %v624, %v622
    %v723 = vpack.c.b16 %v625, %v623
    %v724 = vpack.c.b16 %v628, %v626
    %v725 = vpack.c.b16 %v629, %v627
    %v726 = vpack.c.b16 %v632, %v630
    %v727 = vpack.c.b16 %v633, %v631
    %v728 = vpack.c.b16 %v636, %v634
    %v729 = vpack.c.b16 %v637, %v635
    %v730 = vpack.c.b16 %v640, %v638
    %v731 = vpack.c.b16 %v641, %v639
    %v732 = vpack.c.b16 %v644, %v642
    %v733 = vpack.c.b16 %v645, %v643
    %v734 = vpack.c.b16 %v648, %v646
    %v735 = vpack.c.b16 %v649, %v647
    %v736 = vpack.c.b16 %v652, %v650
    %v737 = vpack.c.b16 %v653, %v651
    %v738 = vpack.c.b16 %v656, %v654
    %v739 = vpack.c.b16 %v657, %v655
    %v740 = vpack.c.b16 %v660, %v658
    %v741 = vpack.c.b16 %v661, %v659
    %v742 = vpack.c.b16 %v664, %v662
    %v743 = vpack.c.b16 %v665, %v663
    %v744 = vpack.c.b16 %v668, %v666
    %v745 = vpack.c.b16 %v669, %v667
    %v746 = vpack.c.b16 %v672, %v670
    %v747 = vpack.c.b16 %v673, %v671
    %v748 = vpack.c.b16 %v676, %v674
    %v749 = vpack.c.b16 %v677, %v675
    %v750 = vpack.c.b16 %v680, %v678
    %v751 = vpack.c.b16 %v681, %v679
    %v752 = vpack.c.b16 %v684, %v682
    %v753 = vpack.c.b16 %v685, %v683
    %v754 = vpack.c.b16 %v688, %v686
    %v755 = vpack.c.b16 %v689, %v687
    %v756 = vpack.c.b16 %v692, %v690
    %v757 = vpack.c.b16 %v693, %v691
    %822 = vmatprep.subr.bf16.mxu0 %v695
    %823 = vmatpush1.bf16.msra.mxu0 %v694
    %824 = vmatprep.subr.bf16.mxu0 %v697
    %825 = vmatpush1.bf16.msra.mxu0 %v696
    %826 = vmatprep.subr.bf16.mxu0 %v699
    %827 = vmatpush1.bf16.msra.mxu0 %v698
    %828 = vmatprep.subr.bf16.mxu0 %v701
    %829 = vmatpush1.bf16.msra.mxu0 %v700
    %830 = vmatprep.subr.bf16.mxu0 %v703
    %831 = vmatpush1.bf16.msra.mxu0 %v702
    %832 = vmatprep.subr.bf16.mxu0 %v705
    %833 = vmatpush1.bf16.msra.mxu0 %v704
    %834 = vmatprep.subr.bf16.mxu0 %v707
    %835 = vmatpush1.bf16.msra.mxu0 %v706
    %836 = vmatprep.subr.bf16.mxu0 %v709
    %837 = vmatpush1.bf16.msra.mxu0 %v708
    %838 = vmatprep.subr.bf16.mxu0 %v711
    %839 = vmatpush1.bf16.msra.mxu0 %v710
    %840 = vmatprep.subr.bf16.mxu0 %v713
    %841 = vmatpush1.bf16.msra.mxu0 %v712
    %842 = vmatprep.subr.bf16.mxu0 %v715
    %843 = vmatpush1.bf16.msra.mxu0 %v714
    %844 = vmatprep.subr.bf16.mxu0 %v717
    %845 = vmatpush1.bf16.msra.mxu0 %v716
    %846 = vmatprep.subr.bf16.mxu0 %v719
    %847 = vmatpush1.bf16.msra.mxu0 %v718
    %848 = vmatprep.subr.bf16.mxu0 %v721
    %849 = vmatpush1.bf16.msra.mxu0 %v720
    %850 = vmatprep.subr.bf16.mxu0 %v723
    %851 = vmatpush1.bf16.msra.mxu0 %v722
    %852 = vmatprep.subr.bf16.mxu0 %v725
    %853 = vmatpush1.bf16.msra.mxu0 %v724
    %854 = vmatprep.mubr.bf16.mxu0 %v423
    %855 = vmatmul.mubr.bf16.gmra.mrb[0].mxu0 %v422
    %v856 = vpop.f32.mrb[0].mxu0
    %v857 = vadd.f32 %v495, %v856
    %v858 = vpop.f32.mrb[0].mxu0
    %v859 = vadd.f32 %v499, %v858
    %v860 = vpop.f32.mrb[0].mxu0
    %v861 = vpop.f32.mrb[0].mxu0
    %862 = vdwg.mxu0
    %863 = vmatprep.subr.bf16.mxu0 %v727
    %864 = vmatpush1.bf16.msra.mxu0 %v726
    %865 = vmatprep.subr.bf16.mxu0 %v729
    %866 = vmatpush1.bf16.msra.mxu0 %v728
    %867 = vmatprep.subr.bf16.mxu0 %v731
    %868 = vmatpush1.bf16.msra.mxu0 %v730
    %869 = vmatprep.subr.bf16.mxu0 %v733
    %870 = vmatpush1.bf16.msra.mxu0 %v732
    %871 = vmatprep.subr.bf16.mxu0 %v735
    %872 = vmatpush1.bf16.msra.mxu0 %v734
    %873 = vmatprep.subr.bf16.mxu0 %v737
    %874 = vmatpush1.bf16.msra.mxu0 %v736
    %875 = vmatprep.subr.bf16.mxu0 %v739
    %876 = vmatpush1.bf16.msra.mxu0 %v738
    %877 = vmatprep.subr.bf16.mxu0 %v741
    %878 = vmatpush1.bf16.msra.mxu0 %v740
    %879 = vmatprep.subr.bf16.mxu0 %v743
    %880 = vmatpush1.bf16.msra.mxu0 %v742
    %881 = vmatprep.subr.bf16.mxu0 %v745
    %882 = vmatpush1.bf16.msra.mxu0 %v744
    %883 = vmatprep.subr.bf16.mxu0 %v747
    %884 = vmatpush1.bf16.msra.mxu0 %v746
    %885 = vmatprep.subr.bf16.mxu0 %v749
    %886 = vmatpush1.bf16.msra.mxu0 %v748
    %887 = vmatprep.subr.bf16.mxu0 %v751
    %888 = vmatpush1.bf16.msra.mxu0 %v750
    %889 = vmatprep.subr.bf16.mxu0 %v753
    %890 = vmatpush1.bf16.msra.mxu0 %v752
    %891 = vmatprep.subr.bf16.mxu0 %v755
    %892 = vmatpush1.bf16.msra.mxu0 %v754
    %893 = vmatprep.subr.bf16.mxu0 %v757
    %894 = vmatpush1.bf16.msra.mxu0 %v756
    %895 = vmatprep.mubr.bf16.mxu0 %v425
    %896 = vmatmul.mubr.bf16.gmra.mrb[0].mxu0 %v424
    %v897 = vpop.f32.mrb[0].mxu0
    %v898 = vadd.f32 %v857, %v897
    %v899 = vpop.f32.mrb[0].mxu0
    %v900 = vadd.f32 %v859, %v899
    %v901 = vpop.f32.mrb[0].mxu0
    %v902 = vpop.f32.mrb[0].mxu0
    %903 = vdwg.mxu0
    %v904 = vmax.f32 %v898, 0.0
    %v905 = vmax.f32 %v900, 0.0
    %v906 = vpack.c.bf16 %v904, %v904
    %v907 = vpack.c.bf16 %v905, %v905
    %v908 = vld [vmem:[#allocation8] sm:$0xff]
    %v909 = vld [vmem:[#allocation8 + $0x8] sm:$0xff]
    %v910 = vld [vmem:[#allocation8 + $0x10] sm:$0xff]
    %v911 = vld [vmem:[#allocation8 + $0x18] sm:$0xff]
    %v912 = vld [vmem:[#allocation8 + $0x20] sm:$0xff]
    %v913 = vld [vmem:[#allocation8 + $0x28] sm:$0xff]
    %v914 = vld [vmem:[#allocation8 + $0x30] sm:$0xff]
    %v915 = vld [vmem:[#allocation8 + $0x38] sm:$0xff]
    %v916 = vld [vmem:[#allocation8 + $0x40] sm:$0xff]
    %v917 = vld [vmem:[#allocation8 + $0x48] sm:$0xff]
    %v918 = vld [vmem:[#allocation8 + $0x50] sm:$0xff]
    %v919 = vld [vmem:[#allocation8 + $0x58] sm:$0xff]
    %v920 = vld [vmem:[#allocation8 + $0x60] sm:$0xff]
    %v921 = vld [vmem:[#allocation8 + $0x68] sm:$0xff]
    %v922 = vld [vmem:[#allocation8 + $0x70] sm:$0xff]
    %v923 = vld [vmem:[#allocation8 + $0x78] sm:$0xff]
    %v924 = vld [vmem:[#allocation8 + $0x80] sm:$0xff]
    %v925 = vld [vmem:[#allocation8 + $0x88] sm:$0xff]
    %v926 = vld [vmem:[#allocation8 + $0x90] sm:$0xff]
    %v927 = vld [vmem:[#allocation8 + $0x98] sm:$0xff]
    %v928 = vld [vmem:[#allocation8 + $0xa0] sm:$0xff]
    %v929 = vld [vmem:[#allocation8 + $0xa8] sm:$0xff]
    %v930 = vld [vmem:[#allocation8 + $0xb0] sm:$0xff]
    %v931 = vld [vmem:[#allocation8 + $0xb8] sm:$0xff]
    %v932 = vld [vmem:[#allocation8 + $0xc0] sm:$0xff]
    %v933 = vld [vmem:[#allocation8 + $0xc8] sm:$0xff]
    %v934 = vld [vmem:[#allocation8 + $0xd0] sm:$0xff]
    %v935 = vld [vmem:[#allocation8 + $0xd8] sm:$0xff]
    %v936 = vld [vmem:[#allocation8 + $0xe0] sm:$0xff]
    %v937 = vld [vmem:[#allocation8 + $0xe8] sm:$0xff]
    %v938 = vld [vmem:[#allocation8 + $0xf0] sm:$0xff]
    %v939 = vld [vmem:[#allocation8 + $0xf8] sm:$0xff]
    %v940 = vld [vmem:[%s6] sm:$0x3]
    %v942 = vlaneseq
    %v943 = vshrl.u32 %v942, 7
    %v944 = vsub.s32 0, %v943
    %v945 = vrot.slane %v940, %v944
    %v946 = vlaneseq
    %v947 = vshrl.u32 %v946, 7
    %v948 = vsub.s32 1, %v947
    %v949 = vrot.slane %v940, %v948
    %v984 = vunpack.c.l.b16 %v908
    %v985 = vunpack.c.h.b16 %v908
    %v986 = vunpack.c.l.b16 %v909
    %v987 = vunpack.c.h.b16 %v909
    %v988 = vunpack.c.l.b16 %v910
    %v989 = vunpack.c.h.b16 %v910
    %v990 = vunpack.c.l.b16 %v911
    %v991 = vunpack.c.h.b16 %v911
    %v992 = vunpack.c.l.b16 %v912
    %v993 = vunpack.c.h.b16 %v912
    %v994 = vunpack.c.l.b16 %v913
    %v995 = vunpack.c.h.b16 %v913
    %v996 = vunpack.c.l.b16 %v914
    %v997 = vunpack.c.h.b16 %v914
    %v998 = vunpack.c.l.b16 %v915
    %v999 = vunpack.c.h.b16 %v915
    %v1000 = vunpack.c.l.b16 %v916
    %v1001 = vunpack.c.h.b16 %v916
    %v1002 = vunpack.c.l.b16 %v917
    %v1003 = vunpack.c.h.b16 %v917
    %v1004 = vunpack.c.l.b16 %v918
    %v1005 = vunpack.c.h.b16 %v918
    %v1006 = vunpack.c.l.b16 %v919
    %v1007 = vunpack.c.h.b16 %v919
    %v1008 = vunpack.c.l.b16 %v920
    %v1009 = vunpack.c.h.b16 %v920
    %v1010 = vunpack.c.l.b16 %v921
    %v1011 = vunpack.c.h.b16 %v921
    %v1012 = vunpack.c.l.b16 %v922
    %v1013 = vunpack.c.h.b16 %v922
    %v1014 = vunpack.c.l.b16 %v923
    %v1015 = vunpack.c.h.b16 %v923
    %v1016 = vunpack.c.l.b16 %v924
    %v1017 = vunpack.c.h.b16 %v924
    %v1018 = vunpack.c.l.b16 %v925
    %v1019 = vunpack.c.h.b16 %v925
    %v1020 = vunpack.c.l.b16 %v926
    %v1021 = vunpack.c.h.b16 %v926
    %v1022 = vunpack.c.l.b16 %v927
    %v1023 = vunpack.c.h.b16 %v927
    %v1024 = vunpack.c.l.b16 %v928
    %v1025 = vunpack.c.h.b16 %v928
    %v1026 = vunpack.c.l.b16 %v929
    %v1027 = vunpack.c.h.b16 %v929
    %v1028 = vunpack.c.l.b16 %v930
    %v1029 = vunpack.c.h.b16 %v930
    %v1030 = vunpack.c.l.b16 %v931
    %v1031 = vunpack.c.h.b16 %v931
    %v1032 = vunpack.c.l.b16 %v932
    %v1033 = vunpack.c.h.b16 %v932
    %v1034 = vunpack.c.l.b16 %v933
    %v1035 = vunpack.c.h.b16 %v933
    %v1036 = vunpack.c.l.b16 %v934
    %v1037 = vunpack.c.h.b16 %v934
    %v1038 = vunpack.c.l.b16 %v935
    %v1039 = vunpack.c.h.b16 %v935
    %v1040 = vunpack.c.l.b16 %v936
    %v1041 = vunpack.c.h.b16 %v936
    %v1042 = vunpack.c.l.b16 %v937
    %v1043 = vunpack.c.h.b16 %v937
    %v1044 = vunpack.c.l.b16 %v938
    %v1045 = vunpack.c.h.b16 %v938
    %v1046 = vunpack.c.l.b16 %v939
    %v1047 = vunpack.c.h.b16 %v939
    %v1048 = vpack.c.b16 %v986, %v984
    %v1049 = vpack.c.b16 %v987, %v985
    %v1050 = vpack.c.b16 %v990, %v988
    %v1051 = vpack.c.b16 %v991, %v989
    %v1052 = vpack.c.b16 %v994, %v992
    %v1053 = vpack.c.b16 %v995, %v993
    %v1054 = vpack.c.b16 %v998, %v996
    %v1055 = vpack.c.b16 %v999, %v997
    %v1056 = vpack.c.b16 %v1002, %v1000
    %v1057 = vpack.c.b16 %v1003, %v1001
    %v1058 = vpack.c.b16 %v1006, %v1004
    %v1059 = vpack.c.b16 %v1007, %v1005
    %v1060 = vpack.c.b16 %v1010, %v1008
    %v1061 = vpack.c.b16 %v1011, %v1009
    %v1062 = vpack.c.b16 %v1014, %v1012
    %v1063 = vpack.c.b16 %v1015, %v1013
    %v1064 = vpack.c.b16 %v1018, %v1016
    %v1065 = vpack.c.b16 %v1019, %v1017
    %v1066 = vpack.c.b16 %v1022, %v1020
    %v1067 = vpack.c.b16 %v1023, %v1021
    %v1068 = vpack.c.b16 %v1026, %v1024
    %v1069 = vpack.c.b16 %v1027, %v1025
    %v1070 = vpack.c.b16 %v1030, %v1028
    %v1071 = vpack.c.b16 %v1031, %v1029
    %v1072 = vpack.c.b16 %v1034, %v1032
    %v1073 = vpack.c.b16 %v1035, %v1033
    %v1074 = vpack.c.b16 %v1038, %v1036
    %v1075 = vpack.c.b16 %v1039, %v1037
    %v1076 = vpack.c.b16 %v1042, %v1040
    %v1077 = vpack.c.b16 %v1043, %v1041
    %v1078 = vpack.c.b16 %v1046, %v1044
    %v1079 = vpack.c.b16 %v1047, %v1045
    %1112 = vmatprep.subr.bf16.mxu0 %v1049
    %1113 = vmatpush1.bf16.msra.mxu0 %v1048
    %1114 = vmatprep.subr.bf16.mxu0 %v1051
    %1115 = vmatpush1.bf16.msra.mxu0 %v1050
    %1116 = vmatprep.subr.bf16.mxu0 %v1053
    %1117 = vmatpush1.bf16.msra.mxu0 %v1052
    %1118 = vmatprep.subr.bf16.mxu0 %v1055
    %1119 = vmatpush1.bf16.msra.mxu0 %v1054
    %1120 = vmatprep.subr.bf16.mxu0 %v1057
    %1121 = vmatpush1.bf16.msra.mxu0 %v1056
    %1122 = vmatprep.subr.bf16.mxu0 %v1059
    %1123 = vmatpush1.bf16.msra.mxu0 %v1058
    %1124 = vmatprep.subr.bf16.mxu0 %v1061
    %1125 = vmatpush1.bf16.msra.mxu0 %v1060
    %1126 = vmatprep.subr.bf16.mxu0 %v1063
    %1127 = vmatpush1.bf16.msra.mxu0 %v1062
    %1128 = vmatprep.subr.bf16.mxu0 %v1065
    %1129 = vmatpush1.bf16.msra.mxu0 %v1064
    %1130 = vmatprep.subr.bf16.mxu0 %v1067
    %1131 = vmatpush1.bf16.msra.mxu0 %v1066
    %1132 = vmatprep.subr.bf16.mxu0 %v1069
    %1133 = vmatpush1.bf16.msra.mxu0 %v1068
    %1134 = vmatprep.subr.bf16.mxu0 %v1071
    %1135 = vmatpush1.bf16.msra.mxu0 %v1070
    %1136 = vmatprep.subr.bf16.mxu0 %v1073
    %1137 = vmatpush1.bf16.msra.mxu0 %v1072
    %1138 = vmatprep.subr.bf16.mxu0 %v1075
    %1139 = vmatpush1.bf16.msra.mxu0 %v1074
    %1140 = vmatprep.subr.bf16.mxu0 %v1077
    %1141 = vmatpush1.bf16.msra.mxu0 %v1076
    %1142 = vmatprep.subr.bf16.mxu0 %v1079
    %1143 = vmatpush1.bf16.msra.mxu0 %v1078
    %1144 = vmatprep.mubr.bf16.mxu0 %v907
    %1145 = vmatmul.mubr.bf16.gmra.mrb[0].mxu0 %v906
    %v1146 = vpop.f32.mrb[0].mxu0
    %v1147 = vadd.f32 %v945, %v1146
    %v1148 = vpop.f32.mrb[0].mxu0
    %v1149 = vadd.f32 %v949, %v1148
    %v1150 = vpop.f32.mrb[0].mxu0
    %v1151 = vpop.f32.mrb[0].mxu0
    %1152 = vdwg.mxu0
    %v1153 = vmax.f32 %v1147, 0.0
    %v1154 = vmax.f32 %v1149, 0.0
    %v1155 = vpack.c.bf16 %v1153, %v1153
    %v1156 = vpack.c.bf16 %v1154, %v1154
    %v1157 = vld [vmem:[#allocation10] sm:$0xf]
    %v1158 = vld [vmem:[#allocation10 + $0x4] sm:$0xf]
    %v1159 = vld [vmem:[#allocation10 + $0x8] sm:$0xf]
    %v1160 = vld [vmem:[#allocation10 + $0xc] sm:$0xf]
    %v1161 = vld [vmem:[#allocation10 + $0x10] sm:$0xf]
    %v1162 = vld [vmem:[#allocation10 + $0x14] sm:$0xf]
    %v1163 = vld [vmem:[#allocation10 + $0x18] sm:$0xf]
    %v1164 = vld [vmem:[#allocation10 + $0x1c] sm:$0xf]
    %v1165 = vld [vmem:[#allocation10 + $0x20] sm:$0xf]
    %v1166 = vld [vmem:[#allocation10 + $0x24] sm:$0xf]
    %v1167 = vld [vmem:[#allocation10 + $0x28] sm:$0xf]
    %v1168 = vld [vmem:[#allocation10 + $0x2c] sm:$0xf]
    %v1169 = vld [vmem:[#allocation10 + $0x30] sm:$0xf]
    %v1170 = vld [vmem:[#allocation10 + $0x34] sm:$0xf]
    %v1171 = vld [vmem:[#allocation10 + $0x38] sm:$0xf]
    %v1172 = vld [vmem:[#allocation10 + $0x3c] sm:$0xf]
    %v1173 = vld [vmem:[#allocation10 + $0x40] sm:$0xf]
    %v1174 = vld [vmem:[#allocation10 + $0x44] sm:$0xf]
    %v1175 = vld [vmem:[#allocation10 + $0x48] sm:$0xf]
    %v1176 = vld [vmem:[#allocation10 + $0x4c] sm:$0xf]
    %v1177 = vld [vmem:[#allocation10 + $0x50] sm:$0xf]
    %v1178 = vld [vmem:[#allocation10 + $0x54] sm:$0xf]
    %v1179 = vld [vmem:[#allocation10 + $0x58] sm:$0xf]
    %v1180 = vld [vmem:[#allocation10 + $0x5c] sm:$0xf]
    %v1181 = vld [vmem:[#allocation10 + $0x60] sm:$0xf]
    %v1182 = vld [vmem:[#allocation10 + $0x64] sm:$0xf]
    %v1183 = vld [vmem:[#allocation10 + $0x68] sm:$0xf]
    %v1184 = vld [vmem:[#allocation10 + $0x6c] sm:$0xf]
    %v1185 = vld [vmem:[#allocation10 + $0x70] sm:$0xf]
    %v1186 = vld [vmem:[#allocation10 + $0x74] sm:$0xf]
    %v1187 = vld [vmem:[#allocation10 + $0x78] sm:$0xf]
    %v1188 = vld [vmem:[#allocation10 + $0x7c] sm:$0xf]
    %v1189 = vld [vmem:[%s8] sm:$0x1]
    %v1191 = vlaneseq
    %v1192 = vshrl.u32 %v1191, 7
    %v1193 = vsub.s32 0, %v1192
    %v1194 = vrot.slane %v1189, %v1193
    %v1228 = vunpack.c.l.b16 %v1157
    %v1229 = vunpack.c.l.b16 %v1158
    %v1230 = vunpack.c.l.b16 %v1159
    %v1231 = vunpack.c.l.b16 %v1160
    %v1232 = vunpack.c.l.b16 %v1161
    %v1233 = vunpack.c.l.b16 %v1162
    %v1234 = vunpack.c.l.b16 %v1163
    %v1235 = vunpack.c.l.b16 %v1164
    %v1236 = vunpack.c.l.b16 %v1165
    %v1237 = vunpack.c.l.b16 %v1166
    %v1238 = vunpack.c.l.b16 %v1167
    %v1239 = vunpack.c.l.b16 %v1168
    %v1240 = vunpack.c.l.b16 %v1169
    %v1241 = vunpack.c.l.b16 %v1170
    %v1242 = vunpack.c.l.b16 %v1171
    %v1243 = vunpack.c.l.b16 %v1172
    %v1244 = vunpack.c.l.b16 %v1173
    %v1245 = vunpack.c.l.b16 %v1174
    %v1246 = vunpack.c.l.b16 %v1175
    %v1247 = vunpack.c.l.b16 %v1176
    %v1248 = vunpack.c.l.b16 %v1177
    %v1249 = vunpack.c.l.b16 %v1178
    %v1250 = vunpack.c.l.b16 %v1179
    %v1251 = vunpack.c.l.b16 %v1180
    %v1252 = vunpack.c.l.b16 %v1181
    %v1253 = vunpack.c.l.b16 %v1182
    %v1254 = vunpack.c.l.b16 %v1183
    %v1255 = vunpack.c.l.b16 %v1184
    %v1256 = vunpack.c.l.b16 %v1185
    %v1257 = vunpack.c.l.b16 %v1186
    %v1258 = vunpack.c.l.b16 %v1187
    %v1259 = vunpack.c.l.b16 %v1188
    %v1260 = vpack.c.b16 %v1229, %v1228
    %v1261 = vpack.c.b16 %v1231, %v1230
    %v1262 = vpack.c.b16 %v1233, %v1232
    %v1263 = vpack.c.b16 %v1235, %v1234
    %v1264 = vpack.c.b16 %v1237, %v1236
    %v1265 = vpack.c.b16 %v1239, %v1238
    %v1266 = vpack.c.b16 %v1241, %v1240
    %v1267 = vpack.c.b16 %v1243, %v1242
    %v1268 = vpack.c.b16 %v1245, %v1244
    %v1269 = vpack.c.b16 %v1247, %v1246
    %v1270 = vpack.c.b16 %v1249, %v1248
    %v1271 = vpack.c.b16 %v1251, %v1250
    %v1272 = vpack.c.b16 %v1253, %v1252
    %v1273 = vpack.c.b16 %v1255, %v1254
    %v1274 = vpack.c.b16 %v1257, %v1256
    %v1275 = vpack.c.b16 %v1259, %v1258
    %1292 = vmatprep.subr.bf16.mxu0 0
    %1293 = vmatpush1.bf16.msra.mxu0 %v1260
    %1294 = vmatprep.subr.bf16.mxu0 0
    %1295 = vmatpush1.bf16.msra.mxu0 %v1261
    %1296 = vmatprep.subr.bf16.mxu0 0
    %1297 = vmatpush1.bf16.msra.mxu0 %v1262
    %1298 = vmatprep.subr.bf16.mxu0 0
    %1299 = vmatpush1.bf16.msra.mxu0 %v1263
    %1300 = vmatprep.subr.bf16.mxu0 0
    %1301 = vmatpush1.bf16.msra.mxu0 %v1264
    %1302 = vmatprep.subr.bf16.mxu0 0
    %1303 = vmatpush1.bf16.msra.mxu0 %v1265
    %1304 = vmatprep.subr.bf16.mxu0 0
    %1305 = vmatpush1.bf16.msra.mxu0 %v1266
    %1306 = vmatprep.subr.bf16.mxu0 0
    %1307 = vmatpush1.bf16.msra.mxu0 %v1267
    %1308 = vmatprep.subr.bf16.mxu0 0
    %1309 = vmatpush1.bf16.msra.mxu0 %v1268
    %1310 = vmatprep.subr.bf16.mxu0 0
    %1311 = vmatpush1.bf16.msra.mxu0 %v1269
    %1312 = vmatprep.subr.bf16.mxu0 0
    %1313 = vmatpush1.bf16.msra.mxu0 %v1270
    %1314 = vmatprep.subr.bf16.mxu0 0
    %1315 = vmatpush1.bf16.msra.mxu0 %v1271
    %1316 = vmatprep.subr.bf16.mxu0 0
    %1317 = vmatpush1.bf16.msra.mxu0 %v1272
    %1318 = vmatprep.subr.bf16.mxu0 0
    %1319 = vmatpush1.bf16.msra.mxu0 %v1273
    %1320 = vmatprep.subr.bf16.mxu0 0
    %1321 = vmatpush1.bf16.msra.mxu0 %v1274
    %1322 = vmatprep.subr.bf16.mxu0 0
    %1323 = vmatpush1.bf16.msra.mxu0 %v1275
    %1324 = vmatprep.mubr.bf16.mxu0 %v1156
    %1325 = vmatmul.mubr.bf16.gmra.mrb[0].mxu0 %v1155
    %v1326 = vpop.f32.mrb[0].mxu0
    %v1327 = vadd.f32 %v1194, %v1326
    %v1328 = vpop.f32.mrb[0].mxu0
    %v1329 = vpop.f32.mrb[0].mxu0
    %v1330 = vpop.f32.mrb[0].mxu0
    %1331 = vdwg.mxu0
    %v1332 = vmax.f32 %v1327, 0.0
    %v1333 = vpack.c.bf16 %v1332, %v1332
    %v1334 = vld [vmem:[#allocation11] sm:$0xf]
    %v1335 = vld [vmem:[#allocation11 + $0x4] sm:$0xf]
    %v1336 = vld [vmem:[#allocation11 + $0x8] sm:$0xf]
    %v1337 = vld [vmem:[#allocation11 + $0xc] sm:$0xf]
    %v1338 = vld [vmem:[#allocation11 + $0x10] sm:$0xf]
    %v1339 = vld [vmem:[#allocation11 + $0x14] sm:$0xf]
    %v1340 = vld [vmem:[#allocation11 + $0x18] sm:$0xf]
    %v1341 = vld [vmem:[#allocation11 + $0x1c] sm:$0xf]
    %v1342 = vld [vmem:[#allocation11 + $0x20] sm:$0xf]
    %v1343 = vld [vmem:[#allocation11 + $0x24] sm:$0xf]
    %v1344 = vld [vmem:[#allocation11 + $0x28] sm:$0xf]
    %v1345 = vld [vmem:[#allocation11 + $0x2c] sm:$0xf]
    %v1346 = vld [vmem:[#allocation11 + $0x30] sm:$0xf]
    %v1347 = vld [vmem:[#allocation11 + $0x34] sm:$0xf]
    %v1348 = vld [vmem:[#allocation11 + $0x38] sm:$0xf]
    %v1349 = vld [vmem:[#allocation11 + $0x3c] sm:$0xf]
    %v1350 = vld [vmem:[%s10] sm:$0x1]
    %v1352 = vlaneseq
    %v1353 = vshrl.u32 %v1352, 7
    %v1354 = vsub.s32 0, %v1353
    %v1355 = vrot.slane %v1350, %v1354
    %v1373 = vunpack.c.l.b16 %v1334
    %v1374 = vunpack.c.l.b16 %v1335
    %v1375 = vunpack.c.l.b16 %v1336
    %v1376 = vunpack.c.l.b16 %v1337
    %v1377 = vunpack.c.l.b16 %v1338
    %v1378 = vunpack.c.l.b16 %v1339
    %v1379 = vunpack.c.l.b16 %v1340
    %v1380 = vunpack.c.l.b16 %v1341
    %v1381 = vunpack.c.l.b16 %v1342
    %v1382 = vunpack.c.l.b16 %v1343
    %v1383 = vunpack.c.l.b16 %v1344
    %v1384 = vunpack.c.l.b16 %v1345
    %v1385 = vunpack.c.l.b16 %v1346
    %v1386 = vunpack.c.l.b16 %v1347
    %v1387 = vunpack.c.l.b16 %v1348
    %v1388 = vunpack.c.l.b16 %v1349
    %v1389 = vpack.c.b16 %v1374, %v1373
    %v1390 = vpack.c.b16 %v1376, %v1375
    %v1391 = vpack.c.b16 %v1378, %v1377
    %v1392 = vpack.c.b16 %v1380, %v1379
    %v1393 = vpack.c.b16 %v1382, %v1381
    %v1394 = vpack.c.b16 %v1384, %v1383
    %v1395 = vpack.c.b16 %v1386, %v1385
    %v1396 = vpack.c.b16 %v1388, %v1387
    %1405 = vmatprep.subr.bf16.mxu0 0
    %1406 = vmatpush1.bf16.msra.mxu0 %v1389
    %1407 = vmatprep.subr.bf16.mxu0 0
    %1408 = vmatpush1.bf16.msra.mxu0 %v1390
    %1409 = vmatprep.subr.bf16.mxu0 0
    %1410 = vmatpush1.bf16.msra.mxu0 %v1391
    %1411 = vmatprep.subr.bf16.mxu0 0
    %1412 = vmatpush1.bf16.msra.mxu0 %v1392
    %1413 = vmatprep.subr.bf16.mxu0 0
    %1414 = vmatpush1.bf16.msra.mxu0 %v1393
    %1415 = vmatprep.subr.bf16.mxu0 0
    %1416 = vmatpush1.bf16.msra.mxu0 %v1394
    %1417 = vmatprep.subr.bf16.mxu0 0
    %1418 = vmatpush1.bf16.msra.mxu0 %v1395
    %1419 = vmatprep.subr.bf16.mxu0 0
    %1420 = vmatpush1.bf16.msra.mxu0 %v1396
    %1421 = vmatprep.subr.bf16.mxu0 0
    %1422 = vmatpush1.bf16.msra.mxu0 0
    %1423 = vmatprep.subr.bf16.mxu0 0
    %1424 = vmatpush1.bf16.msra.mxu0 0
    %1425 = vmatprep.subr.bf16.mxu0 0
    %1426 = vmatpush1.bf16.msra.mxu0 0
    %1427 = vmatprep.subr.bf16.mxu0 0
    %1428 = vmatpush1.bf16.msra.mxu0 0
    %1429 = vmatprep.subr.bf16.mxu0 0
    %1430 = vmatpush1.bf16.msra.mxu0 0
    %1431 = vmatprep.subr.bf16.mxu0 0
    %1432 = vmatpush1.bf16.msra.mxu0 0
    %1433 = vmatprep.subr.bf16.mxu0 0
    %1434 = vmatpush1.bf16.msra.mxu0 0
    %1435 = vmatprep.subr.bf16.mxu0 0
    %1436 = vmatpush1.bf16.msra.mxu0 0
    %1437 = vmatprep.mubr.bf16.mxu0 0
    %1438 = vmatmul.mubr.bf16.gmra.mrb[0].mxu0 %v1333
    %v1439 = vpop.f32.mrb[0].mxu0
    %v1440 = vadd.f32 %v1355, %v1439
    %v1441 = vpop.f32.mrb[0].mxu0
    %v1442 = vpop.f32.mrb[0].mxu0
    %v1443 = vpop.f32.mrb[0].mxu0
    %1444 = vdwg.mxu0
    %1445 = vst [vmem:[#allocation13] sm:$0xff] %v1440
    // Predicated region
    $region70: #{tpu_custom_call.1} parent=1 // pred_check
      _
    $region71: #{tpu_custom_call.1} parent=1 // pred_check_branch
      %1447 = sbr.rel (0) target = $region73
    $region72: #{tpu_custom_call.1} parent=1 // pred_region
      %s1449 = ssub.s32 128, 128
      %1450 = vsyncadd [#allocation4], %s1449
      %s1452 = sshll.u32 [#allocation13], 4
      %s1453 = int_to_ptr.vmem [resolvable:$true] %s1452
      %1455 = dma.vmem_to_hbm [thread:$0]  %s1453, 128, %s11, [#allocation4]
    $region73: #{tpu_custom_call.1} parent=1 // pred_fallthru
      _
    // Predicated region
    $region74: #{tpu_custom_call.1} parent=1 // pred_check
      _
    $region75: #{tpu_custom_call.1} parent=1 // pred_check_branch
      %1457 = sbr.rel (0) target = $region77
    $region76: #{tpu_custom_call.1} parent=1 // pred_region
      %1458 = dma.done [#allocation4], 128
    $region77: #{tpu_custom_call.1} parent=1 // pred_fallthru
      _
    %1459 = vsyncpa [#allocation3], 1
    %1460 = vsyncpa [#allocation6], 1
    %1461 = vsyncpa [#allocation9], 1
    %1462 = vsyncpa [#allocation12], 1
    %1463 = vsyncpa [#allocation4], 1

</llo_original>
